<compile_context>
chip_gen: v7x
topology: tpu7x:2x2x1
jax: 0.10.0
libtpu: 0.0.40
codegen_flags: <defaults>
</compile_context>

<pallas_src>
import math
from functools import partial

import jax
import jax.numpy as jnp
import numpy as np
from jax import lax
from jax.experimental import pallas as pl
from jax.experimental.pallas import tpu as pltpu


# -----------------------------------------------------------------------------
# Tiled matmul kernel (fused QKV projection and the wo projection)
# -----------------------------------------------------------------------------
def _matmul_kernel(x_ref, w_ref, o_ref, acc_ref):
    @pl.when(pl.program_id(2) == 0)
    def _init():
        acc_ref[...] = jnp.zeros_like(acc_ref)

    acc_ref[...] += jnp.dot(x_ref[...], w_ref[...],
                            preferred_element_type=jnp.float32)

    @pl.when(pl.program_id(2) == pl.num_programs(2) - 1)
    def _finalize():
        o_ref[...] = acc_ref[...].astype(o_ref.dtype)


def pallas_matmul(x, w, *, tm=256, tn=256, tk=512):
    """x: (M, K) @ w: (K, N) -> (M, N), tiled with an f32 VMEM accumulator.

    256/256/512 f32 tiles keep the double-buffered working set at a few MiB —
    far under every generation's scoped VMEM — while amortizing the ~0.35 us
    per-grid-step overhead.  Tiles collapse to the full dims when the problem
    is smaller than a tile.
    """
    M, K = x.shape
    K2, N = w.shape
    assert K == K2
    tm = M if M <= tm else tm
    tn = N if N <= tn else tn
    tk = K if K <= tk else tk
    # TODO(synk): pad / cdiv-grid for shapes not divisible by the tiles.
    assert M % tm == 0 and N % tn == 0 and K % tk == 0, (M, N, K, tm, tn, tk)

    cost = pl.CostEstimate(
        flops=2 * M * N * K,
        transcendentals=0,
        bytes_accessed=(M * K + K * N + M * N) * x.dtype.itemsize,
    )
    return pl.pallas_call(
        _matmul_kernel,
        out_shape=jax.ShapeDtypeStruct((M, N), x.dtype),
        grid_spec=pltpu.PrefetchScalarGridSpec(
            num_scalar_prefetch=0,
            grid=(M // tm, N // tn, K // tk),
            in_specs=[
                pl.BlockSpec((tm, tk), lambda i, j, k: (i, k)),
                pl.BlockSpec((tk, tn), lambda i, j, k: (k, j)),
            ],
            out_specs=pl.BlockSpec((tm, tn), lambda i, j, k: (i, j)),
            scratch_shapes=[pltpu.VMEM((tm, tn), jnp.float32)],
        ),
        compiler_params=pltpu.CompilerParams(
            dimension_semantics=("parallel", "parallel", "arbitrary")),
        cost_estimate=cost,
    )(x, w)


# -----------------------------------------------------------------------------
# Flash-style attention kernel: RoPE + causal online-softmax attention.
# Grid: (batch, q_tiles, kv_tiles).  Heads are processed in-kernel on a
# lane-dense (tile, H*D) slab so the final store is one full-width write.
# -----------------------------------------------------------------------------
def _flash_attn_kernel(q_ref, k_ref, v_ref, cosq_ref, sinq_ref, cosk_ref,
                       sink_ref, o_ref, m_sc, l_sc, acc_sc,
                       *, n_heads, head_dim, tq, tk):
    qi = pl.program_id(1)
    ki = pl.program_id(2)
    d = head_dim
    d2 = d // 2
    # bf16 models use bf16 MXU operands (f32 accumulate); f32 models stay f32.
    mxu_dtype = jnp.bfloat16 if o_ref.dtype == jnp.bfloat16 else jnp.float32

    @pl.when(ki == 0)
    def _init():
        m_sc[...] = jnp.full_like(m_sc, -jnp.inf)
        l_sc[...] = jnp.zeros_like(l_sc)
        acc_sc[...] = jnp.zeros_like(acc_sc)

    # Causal: skip KV tiles that lie entirely above the diagonal (roughly half
    # of the compute for long sequences).
    @pl.when(ki * tk <= qi * tq + (tq - 1))
    def _compute():
        cos_q = cosq_ref[...]          # (tq, d/2) f32
        sin_q = sinq_ref[...]
        cos_k = cosk_ref[...]          # (tk, d/2) f32
        sin_k = sink_ref[...]

        row = qi * tq + lax.broadcasted_iota(jnp.int32, (tq, tk), 0)
        col = ki * tk + lax.broadcasted_iota(jnp.int32, (tq, tk), 1)
        allow = col <= row

        # TODO(synk): for many heads, replace the static unroll with
        #             lax.fori_loop or a head grid axis to bound live ranges.
        for h in range(n_heads):
            # Per-head-contiguous half-split layout [evens | odds]; slices are
            # taken directly from the refs (only touched operands go live).
            qh = q_ref[:, h * d:(h + 1) * d]          # (tq, d)
            kh = k_ref[:, h * d:(h + 1) * d]          # (tk, d)
            qe, qo = qh[:, :d2], qh[:, d2:]
            ke, ko = kh[:, :d2], kh[:, d2:]
            # RoPE: pure f32 VPU elementwise (1/sqrt(D) already folded into wq
            # at weight-prep time), result is one contiguous (tile, d) value.
            qr = jnp.concatenate([qe * cos_q - qo * sin_q,
                                  qo * cos_q + qe * sin_q], axis=-1)
            kr = jnp.concatenate([ke * cos_k - ko * sin_k,
                                  ko * cos_k + ke * sin_k], axis=-1)

            # Single MXU dot per head: full head_dim contraction depth, no k.T.
            s = lax.dot_general(qr.astype(mxu_dtype), kr.astype(mxu_dtype),
                                (((1,), (1,)), ((), ())),
                                preferred_element_type=jnp.float32)  # (tq, tk)
            s = jnp.where(allow, s, jnp.float32(-1e30))   # mask stays in f32

            # Online softmax update (f32).
            m_prev = m_sc[:, h:h + 1]                                # (tq, 1)
            m_new = jnp.maximum(m_prev, jnp.max(s, axis=-1, keepdims=True))
            alpha = jnp.exp(m_prev - m_new)
            p = jnp.exp(s - m_new)                                   # (tq, tk)
            l_sc[:, h:h + 1] = (alpha * l_sc[:, h:h + 1]
                                + jnp.sum(p, axis=-1, keepdims=True))
            m_sc[:, h:h + 1] = m_new

            vh = v_ref[:, h * d:(h + 1) * d]                         # (tk, d)
            pv = jnp.dot(p.astype(mxu_dtype), vh.astype(mxu_dtype),
                         preferred_element_type=jnp.float32)
            acc_sc[:, h * d:(h + 1) * d] = (
                alpha * acc_sc[:, h * d:(h + 1) * d] + pv)

    @pl.when(ki == pl.num_programs(2) - 1)
    def _finalize():
        outs = []
        for h in range(n_heads):
            l_h = l_sc[:, h:h + 1]
            # EUP approximate reciprocal + one Newton step (~f32 accuracy).
            r = pl.reciprocal(l_h, approx=True)
            r = r * (2.0 - l_h * r)
            outs.append(acc_sc[:, h * d:(h + 1) * d] * r)
        # Single lane-dense (tq, H*D) store — no per-head masked partial stores.
        o_ref[...] = jnp.concatenate(outs, axis=-1).astype(o_ref.dtype)


def pallas_flash_attention(qkv, freqs_cos, freqs_sin, n_heads, head_dim,
                           *, tq=256, tk=256):
    """qkv: (B, S, 3*H*D) token-major slab (q/k columns RoPE-permuted);
    freqs_cos/sin: (S, head_dim//2) f32 tables shared by all heads."""
    B, S, three_hd = qkv.shape
    hd = n_heads * head_dim
    assert three_hd == 3 * hd
    assert head_dim % 2 == 0
    d2 = head_dim // 2
    assert freqs_cos.shape == (S, d2) and freqs_sin.shape == (S, d2)

    tq = S if S <= tq else tq
    tk = S if S <= tk else tk
    assert S % tq == 0 and S % tk == 0, (S, tq, tk)
    nq, nk = S // tq, S // tk

    if hd % 128 == 0:
        # q/k/v are column-blocks of the SAME fused slab: three BlockSpecs on
        # one array, no extra split copies in HBM.
        q_in = k_in = v_in = qkv
        q_spec = pl.BlockSpec((None, tq, hd), lambda b, qi, ki: (b, qi, 0))
        k_spec = pl.BlockSpec((None, tk, hd), lambda b, qi, ki: (b, ki, 1))
        v_spec = pl.BlockSpec((None, tk, hd), lambda b, qi, ki: (b, ki, 2))
    else:
        # TODO(synk): fallback materializes a split; fuse the split into the
        #             QKV matmul outputs for non-128-aligned H*D instead.
        q_in, k_in, v_in = jnp.split(qkv, 3, axis=-1)
        q_spec = pl.BlockSpec((None, tq, hd), lambda b, qi, ki: (b, qi, 0))
        k_spec = pl.BlockSpec((None, tk, hd), lambda b, qi, ki: (b, ki, 0))
        v_spec = pl.BlockSpec((None, tk, hd), lambda b, qi, ki: (b, ki, 0))

    kernel = partial(_flash_attn_kernel, n_heads=n_heads, head_dim=head_dim,
                     tq=tq, tk=tk)
    cost = pl.CostEstimate(
        flops=4 * B * n_heads * S * S * head_dim,
        transcendentals=B * n_heads * S * S,
        bytes_accessed=(B * S * 4 * hd) * qkv.dtype.itemsize,
    )
    return pl.pallas_call(
        kernel,
        out_shape=jax.ShapeDtypeStruct((B, S, hd), qkv.dtype),
        grid_spec=pltpu.PrefetchScalarGridSpec(
            num_scalar_prefetch=0,
            grid=(B, nq, nk),
            in_specs=[
                q_spec, k_spec, v_spec,
                pl.BlockSpec((tq, d2), lambda b, qi, ki: (qi, 0)),  # cos for q rows
                pl.BlockSpec((tq, d2), lambda b, qi, ki: (qi, 0)),  # sin for q rows
                pl.BlockSpec((tk, d2), lambda b, qi, ki: (ki, 0)),  # cos for k rows
                pl.BlockSpec((tk, d2), lambda b, qi, ki: (ki, 0)),  # sin for k rows
            ],
            out_specs=pl.BlockSpec((None, tq, hd), lambda b, qi, ki: (b, qi, 0)),
            scratch_shapes=[
                pltpu.VMEM((tq, n_heads), jnp.float32),   # running max  m
                pltpu.VMEM((tq, n_heads), jnp.float32),   # running sum  l
                pltpu.VMEM((tq, hd), jnp.float32),        # running acc (all heads)
            ],
        ),
        compiler_params=pltpu.CompilerParams(
            # batch AND query-tile axes are parallel -> both v7x TCs get work
            # even when B == 1; KV axis is the sequential reduction.
            dimension_semantics=("parallel", "parallel", "arbitrary"),
            # Explicit scoped-VMEM limit sized for v7x's 64 MiB physical VMEM;
            # with tq=tk=256 the f32 working set stays well under it.
            vmem_limit_bytes=48 * 1024 * 1024,
        ),
        cost_estimate=cost,
    )(q_in, k_in, v_in, freqs_cos, freqs_sin, freqs_cos, freqs_sin)


# -----------------------------------------------------------------------------
# Parameters, RoPE tables, one-time weight preprocessing
# -----------------------------------------------------------------------------
def xavier_uniform(key, fan_in, fan_out, gain=1.0, dtype=jnp.float32):
    bound = gain * math.sqrt(6.0 / (fan_in + fan_out))
    return jax.random.uniform(key, (fan_in, fan_out), dtype, -bound, bound)


def init_attention_params(key, dim, n_heads, gain=1.0):
    head_dim = dim // n_heads
    k1, k2, k3, k4 = jax.random.split(key, 4)
    # stored as (in_features, out_features) so that y = x @ W
    return {
        "wq": xavier_uniform(k1, dim, n_heads * head_dim, gain),
        "wk": xavier_uniform(k2, dim, n_heads * head_dim, gain),
        "wv": xavier_uniform(k3, dim, n_heads * head_dim, gain),
        "wo": xavier_uniform(k4, n_heads * head_dim, dim, gain),
    }


def precompute_freqs(seq_len, head_dim, theta=10000.0):
    freqs = 1.0 / (theta ** (np.arange(0, head_dim, 2)[: head_dim // 2] / head_dim))
    t = np.arange(seq_len)
    ang = np.outer(t, freqs)                       # (S, D/2)
    cos = jnp.asarray(np.cos(ang), jnp.float32)
    sin = jnp.asarray(np.sin(ang), jnp.float32)
    return cos, sin


def _rope_permutation(n_heads, head_dim):
    """Column order mapping interleaved (re, im) pairs -> per-head-contiguous
    half-split layout [evens_h0 | odds_h0 | evens_h1 | odds_h1 | ...], so each
    head's q/k is one contiguous slice and the score dot contracts the full
    head_dim."""
    order = []
    for h in range(n_heads):
        base = h * head_dim
        order += [base + 2 * i for i in range(head_dim // 2)]
        order += [base + 2 * i + 1 for i in range(head_dim // 2)]
    return np.asarray(order, np.int32)


def prepare_attention_weights(params, n_heads, head_dim):
    """One-time preprocessing hoisted out of the per-step forward:
    RoPE column permutation + 1/sqrt(head_dim) folded into wq, fused
    [wq'|wk'|wv] projection slab.  wo is untouched."""
    order = _rope_permutation(n_heads, head_dim)
    scale = 1.0 / math.sqrt(head_dim)
    w_qkv = jnp.concatenate(
        [params["wq"][:, order] * scale, params["wk"][:, order], params["wv"]],
        axis=1)
    return {"w_qkv": w_qkv, "wo": params["wo"]}


# -----------------------------------------------------------------------------
# Attention forward (JAX glue around the Pallas kernels)
# -----------------------------------------------------------------------------
def attention_forward(prep, x, start_pos, freqs_cos, freqs_sin, n_heads):
    """Pallas implementation of Attention.forward (single-shot causal pass).

    The causal mask is generated inside the attention kernel.
    # TODO(synk): KV-cache mutation (cache_k/cache_v, start_pos) and arbitrary
    # externally-supplied masks are not implemented in this synthetic setting.
    """
    B, S, dim = x.shape
    head_dim = dim // n_heads
    hd = n_heads * head_dim

    # Fused QKV projection: x read from HBM once; RoPE permutation and the
    # 1/sqrt(D) scale are already baked into prep["w_qkv"].
    qkv = pallas_matmul(x.reshape(B * S, dim), prep["w_qkv"]).reshape(B, S, 3 * hd)

    attn = pallas_flash_attention(qkv, freqs_cos, freqs_sin, n_heads, head_dim)
    return pallas_matmul(attn.reshape(B * S, hd), prep["wo"]).reshape(B, S, dim)


# -----------------------------------------------------------------------------
# Pure-JAX reference (mirrors the PyTorch forward, complex/interleaved RoPE)
# -----------------------------------------------------------------------------
def reference_forward(params, x, freqs_cos, freqs_sin, mask, n_heads):
    B, S, dim = x.shape
    head_dim = dim // n_heads
    xq = (x @ params["wq"]).reshape(B, S, n_heads, head_dim)
    xk = (x @ params["wk"]).reshape(B, S, n_heads, head_dim)
    xv = (x @ params["wv"]).reshape(B, S, n_heads, head_dim)

    def rope(t):
        tr = t.reshape(B, S, n_heads, head_dim // 2, 2)
        c = freqs_cos[None, :, None, :]
        s = freqs_sin[None, :, None, :]
        re = tr[..., 0] * c - tr[..., 1] * s
        im = tr[..., 0] * s + tr[..., 1] * c
        return jnp.stack([re, im], axis=-1).reshape(B, S, n_heads, head_dim)

    xq, xk = rope(xq), rope(xk)
    q = xq.transpose(0, 2, 1, 3)
    k = xk.transpose(0, 2, 1, 3)
    v = xv.transpose(0, 2, 1, 3)
    scores = jnp.einsum("bhqd,bhkd->bhqk", q, k) / math.sqrt(head_dim) + mask
    p = jax.nn.softmax(scores.astype(jnp.float32), axis=-1)
    out = jnp.einsum("bhqk,bhkd->bhqd", p, v)
    out = out.transpose(0, 2, 1, 3).reshape(B, S, -1)
    return out @ params["wo"]


# -----------------------------------------------------------------------------
if __name__ == "__main__":
    # Small, fully lane-aligned config consistent with TransformerModelArgs
    # semantics (max_seq_len default 16; head_dim=128 keeps every per-head
    # slice on a 128-lane boundary).
    B, S, DIM, N_HEADS = 2, 16, 256, 2
    HEAD_DIM = DIM // N_HEADS

    key = jax.random.PRNGKey(0)
    kx, kp = jax.random.split(key)
    x = jax.random.normal(kx, (B, S, DIM), jnp.float32)
    params = init_attention_params(kp, DIM, N_HEADS, gain=1.0)

    # One-time preprocessing (hoisted out of the per-step critical path).
    prep = prepare_attention_weights(params, N_HEADS, HEAD_DIM)
    freqs_cos, freqs_sin = precompute_freqs(S, HEAD_DIM)

    out = attention_forward(prep, x, 0, freqs_cos, freqs_sin, N_HEADS)
    out = jax.block_until_ready(out)

    # Reference uses the standard additive causal mask (as the PyTorch model does).
    mask = jnp.where(
        jnp.arange(S)[:, None] >= jnp.arange(S)[None, :], 0.0, -1e9
    ).astype(jnp.float32)
    ref = reference_forward(params, x, freqs_cos, freqs_sin, mask, N_HEADS)

    assert out.shape == (B, S, DIM)
    err = jnp.max(jnp.abs(out - ref))
    # tolerance leaves headroom for the EUP approximate-reciprocal (+ Newton
    # polish) softmax normalization and MXU accumulation-order differences
    assert jnp.allclose(out, ref, atol=1e-3, rtol=1e-3), f"max abs err {err}"
    print("KERNEL_OK")
</pallas_src>

<mosaic_0001>
module attributes {stable_mosaic.version = 11 : i64} {
  func.func @_matmul_kernel(%arg0: i32, %arg1: i32, %arg2: i32, %arg3: memref<32x256xf32, #tpu.memory_space<vmem>>, %arg4: memref<256x256xf32, #tpu.memory_space<vmem>>, %arg5: memref<32x256xf32, #tpu.memory_space<vmem>>, %arg6: memref<32x256xf32, #tpu.memory_space<vmem>>) attributes {dimension_semantics = [#tpu.dimension_semantics<parallel>, #tpu.dimension_semantics<parallel>, #tpu.dimension_semantics<arbitrary>], iteration_bounds = array<i64: 1, 3, 1>, scalar_prefetch = 0 : i64, scratch_operands = 1 : i64, tpu.core_type = #tpu.core_type<tc>, window_params = [{transform_indices = @transform_0, window_bounds = array<i64: 32, 256>}, {transform_indices = @transform_1, window_bounds = array<i64: 256, 256>}, {transform_indices = @transform_2, window_bounds = array<i64: 32, 256>}]} {
    %c0_i32 = arith.constant 0 : i32
    %0 = arith.cmpi eq, %arg2, %c0_i32 : i32
    %1 = arith.extui %0 : i1 to i32
    %c0_i32_0 = arith.constant 0 : i32
    %2 = arith.cmpi ne, %1, %c0_i32_0 : i32
    scf.if %2 {
      %cst_10 = arith.constant 0.000000e+00 : f32
      %12 = vector.broadcast %cst_10 : f32 to vector<32x256xf32>
      %c0_11 = arith.constant 0 : index
      %c0_12 = arith.constant 0 : index
      %13 = vector.load %arg6[%c0_11, %c0_12] : memref<32x256xf32, #tpu.memory_space<vmem>>, vector<32x256xf32>
      tpu.vector_store %arg6[%c0_11, %c0_12], %12 {strides = array<i32>} : memref<32x256xf32, #tpu.memory_space<vmem>>, vector<32x256xf32>,
    } else {
    }
    %c0 = arith.constant 0 : index
    %c0_1 = arith.constant 0 : index
    %3 = vector.load %arg6[%c0, %c0_1] : memref<32x256xf32, #tpu.memory_space<vmem>>, vector<32x256xf32>
    %c0_2 = arith.constant 0 : index
    %c0_3 = arith.constant 0 : index
    %4 = vector.load %arg3[%c0_2, %c0_3] : memref<32x256xf32, #tpu.memory_space<vmem>>, vector<32x256xf32>
    %c0_4 = arith.constant 0 : index
    %c0_5 = arith.constant 0 : index
    %5 = vector.load %arg4[%c0_4, %c0_5] : memref<256x256xf32, #tpu.memory_space<vmem>>, vector<256x256xf32>
    %cst = arith.constant dense<0.000000e+00> : vector<32x256xf32>
    %6 = tpu.matmul %4, %5, %cst {dimension_numbers = #tpu.dot_dimension_numbers<[1], [0], [0], [1], [0, 0, 1, 1], [], []>} : vector<32x256xf32>, vector<256x256xf32>, vector<32x256xf32> -> vector<32x256xf32>
    %7 = arith.addf %3, %6 : vector<32x256xf32>
    %c0_6 = arith.constant 0 : index
    %c0_7 = arith.constant 0 : index
    %8 = vector.load %arg6[%c0_6, %c0_7] : memref<32x256xf32, #tpu.memory_space<vmem>>, vector<32x256xf32>
    tpu.vector_store %arg6[%c0_6, %c0_7], %7 {strides = array<i32>} : memref<32x256xf32, #tpu.memory_space<vmem>>, vector<32x256xf32>,
    %c0_i32_8 = arith.constant 0 : i32
    %9 = arith.cmpi eq, %arg2, %c0_i32_8 : i32
    %10 = arith.extui %9 : i1 to i32
    %c0_i32_9 = arith.constant 0 : i32
    %11 = arith.cmpi ne, %10, %c0_i32_9 : i32
    scf.if %11 {
      %c0_10 = arith.constant 0 : index
      %c0_11 = arith.constant 0 : index
      %12 = vector.load %arg6[%c0_10, %c0_11] : memref<32x256xf32, #tpu.memory_space<vmem>>, vector<32x256xf32>
      %c0_12 = arith.constant 0 : index
      %c0_13 = arith.constant 0 : index
      %13 = vector.load %arg5[%c0_12, %c0_13] : memref<32x256xf32, #tpu.memory_space<vmem>>, vector<32x256xf32>
      tpu.vector_store %arg5[%c0_12, %c0_13], %12 {strides = array<i32>} : memref<32x256xf32, #tpu.memory_space<vmem>>, vector<32x256xf32>,
    } else {
    }
    return
  }
  func.func @transform_0(%arg0: i32, %arg1: i32, %arg2: i32) -> (i32, i32) {
    %c0_i32 = arith.constant 0 : i32
    return %arg0, %arg2 : i32, i32
  }
  func.func @transform_1(%arg0: i32, %arg1: i32, %arg2: i32) -> (i32, i32) {
    %c0_i32 = arith.constant 0 : i32
    return %arg2, %arg1 : i32, i32
  }
  func.func @transform_2(%arg0: i32, %arg1: i32, %arg2: i32) -> (i32, i32) {
    %c0_i32 = arith.constant 0 : i32
    return %arg0, %arg1 : i32, i32
  }
}

</mosaic_0001>

<llo_original>
// kernel: tpu_custom_call.1
$region0: #{tpu_custom_call.1}
  #allocation0 [shape = 'u32[]', space=smem, size = 0x4, offset = 0x4, fixed_abs, tag = 'smem constant byte address 0x4 - core index']
  #allocation1 [shape = 'u32[144,128]{1,0:T(1,128)}', space=vmem, size = 0x12000, scoped, tag = 'internal scratch']
  #allocation2 [shape = 'f32[32,256]{1,0:T(8,128)}', space=vmem, size = 0x8000, scoped, tag = 'scratch operand']
  %s0 = inlined_call_operand.hbm [shape: f32[32,256], index: 0, kind: input, shape index: {}]
  %s1 = inlined_call_operand.hbm [shape: f32[256,768], index: 1, kind: input, shape index: {}]
  %s2 = inlined_call_operand.hbm [shape: f32[32,768], index: 2, kind: output, shape index: {}]
  %s3 = sld [smem:[#allocation0]]
  $region57: #{tpu_custom_call.1} parent=0
    _
  %s5 = ssub.s32 1, %s3
  %s6 = scalar_select 0, %s5, %s3
  $region1: #{tpu_custom_call.1} parent=0
    #allocation3 [shape = 'u8[32768]{0}', space=vmem, size = 0x8000, scoped, tag = 'input window, operand 0, single buffered']
    #allocation4 [shape = 's32[2]{0}', space=sflag, size = 0x8, scoped, tag = 'scoped memory for tpu_custom_call.1']
    #allocation5 [shape = 's32[2]{0}', space=sflag, size = 0x8, scoped, tag = 'scoped memory for tpu_custom_call.1']
    #allocation6 [shape = 'u8[524288]{0}', space=vmem, size = 0x80000, scoped, tag = 'input window, operand 1']
    #allocation7 [shape = 's32[2]{0}', space=sflag, size = 0x8, scoped, tag = 'scoped memory for tpu_custom_call.1']
    #allocation8 [shape = 'u8[65536]{0}', space=vmem, size = 0x10000, scoped, tag = 'output window, operand 0']
    %7 = vsyncpa [#allocation4], 0
    %8 = vsyncpa [#allocation7], 0
    %s9 = scalar_lea.sflag [#allocation7], 1
    %10 = vsyncpa %s9, 0
    %11 = vsyncpa [#allocation5], 0
    %s12 = scalar_lea.sflag [#allocation5], 1
    %13 = vsyncpa %s12, 0
    loop: start=0, step=1, limit=5
    $region2: #{tpu_custom_call.1} parent=1 // loop_pre_header
      _
    $region3: #{tpu_custom_call.1} parent=1 // loop_header
      %s15 = sphi 0, %s19
      %p16 = scmp.ge.s32.totalorder %s15, 5
      %s22 = sphi 0, %s41
      %s23 = sphi 0, %s37
      %s24 = sphi 0, %s33
      %s25 = sphi 0, %s22
      %s26 = sphi 0, %s23
      %s27 = sphi 0, %s24
      %s28 = sphi 0, %s25
      %s29 = sphi 0, %s26
      %s30 = sphi 0, %s27
      %s46 = sphi 0, %s48
      %s49 = sphi 0, %s46
      %s50 = sphi 0, %s49
      %s66 = sphi 0, %s50
      %s74 = sphi 0, %s76
      %s77 = sphi 0, %s74
      %s78 = sphi 0, %s77
      %s94 = sphi 0, %s78
      %s102 = sphi 0, %s104
      %s105 = sphi 0, %s102
      %s106 = sphi 0, %s105
      %s122 = sphi 0, %s106
    $region4: #{tpu_custom_call.1} parent=1 // loop_header_branch
      %18 = sbr.rel (%p16) target = $region8
    $region5: #{tpu_custom_call.1} parent=1 // loop_body
      %s20 = ssub.s32 %s15, 1
      %s21 = ssub.s32 %s15, 2
      %s31 = sadd.s32 1, %s24
      %p32 = scmp.ge.s32.totalorder %s31, 1
      %s33 = scalar_select %p32, 0, %s31
      %s34 = sadd.s32 1, %s23
      %s35 = scalar_select %p32, %s34, %s23
      %p36 = scmp.ge.s32.totalorder %s35, 3
      %s37 = scalar_select %p36, 0, %s35
      %s38 = sadd.s32 1, %s22
      %s39 = scalar_select %p36, %s38, %s22
      %p40 = scmp.ge.s32.totalorder %s39, 1
      %s41 = scalar_select %p40, 0, %s39
      %s42 = ssub.s32 %s22, %s41
      %s43 = ssub.s32 %s24, %s33
      %s44 = sor.u32 %s42, %s43
      %p45 = scmp.eq.s32.totalorder %s44, 0
      %s47 = sadd.s32 %s46, 1
      %s48 = scalar_select %p45, %s46, %s47
      %p51 = pneg %p45
      %p52 = scmp.eq.s32.totalorder %s15, 2
      %p53 = por %p51, %p52
      %p54 = scmp.ne.s32.totalorder %s46, %s49
      %p55 = scmp.eq.s32.totalorder %s15, 0
      %p56 = por %p54, %p55
      %p57 = scmp.ne.s32.totalorder %s46, %s49
      %p58 = scmp.eq.s32.totalorder %s20, 2
      %p59 = por %p57, %p58
      %p60 = scmp.ne.s32.totalorder %s49, %s50
      %p61 = scmp.eq.s32.totalorder %s20, 0
      %p62 = por %p60, %p61
      %p63 = scmp.ne.s32.totalorder %s49, %s50
      %p64 = scmp.eq.s32.totalorder %s21, 2
      %p65 = por %p63, %p64
      %p67 = scmp.ne.s32.totalorder %s50, %s66
      %p68 = scmp.eq.s32.totalorder %s21, 0
      %p69 = por %p67, %p68
      %s70 = ssub.s32 %s24, %s33
      %s71 = ssub.s32 %s23, %s37
      %s72 = sor.u32 %s70, %s71
      %p73 = scmp.eq.s32.totalorder %s72, 0
      %s75 = sadd.s32 %s74, 1
      %s76 = scalar_select %p73, %s74, %s75
      %p79 = pneg %p73
      %p80 = scmp.eq.s32.totalorder %s15, 2
      %p81 = por %p79, %p80
      %p82 = scmp.ne.s32.totalorder %s74, %s77
      %p83 = scmp.eq.s32.totalorder %s15, 0
      %p84 = por %p82, %p83
      %p85 = scmp.ne.s32.totalorder %s74, %s77
      %p86 = scmp.eq.s32.totalorder %s20, 2
      %p87 = por %p85, %p86
      %p88 = scmp.ne.s32.totalorder %s77, %s78
      %p89 = scmp.eq.s32.totalorder %s20, 0
      %p90 = por %p88, %p89
      %p91 = scmp.ne.s32.totalorder %s77, %s78
      %p92 = scmp.eq.s32.totalorder %s21, 2
      %p93 = por %p91, %p92
      %p95 = scmp.ne.s32.totalorder %s78, %s94
      %p96 = scmp.eq.s32.totalorder %s21, 0
      %p97 = por %p95, %p96
      %s98 = ssub.s32 %s22, %s41
      %s99 = ssub.s32 %s23, %s37
      %s100 = sor.u32 %s98, %s99
      %p101 = scmp.eq.s32.totalorder %s100, 0
      %s103 = sadd.s32 %s102, 1
      %s104 = scalar_select %p101, %s102, %s103
      %p107 = pneg %p101
      %p108 = scmp.eq.s32.totalorder %s15, 2
      %p109 = por %p107, %p108
      %p110 = scmp.ne.s32.totalorder %s102, %s105
      %p111 = scmp.eq.s32.totalorder %s15, 0
      %p112 = por %p110, %p111
      %p113 = scmp.ne.s32.totalorder %s102, %s105
      %p114 = scmp.eq.s32.totalorder %s20, 2
      %p115 = por %p113, %p114
      %p116 = scmp.ne.s32.totalorder %s105, %s106
      %p117 = scmp.eq.s32.totalorder %s20, 0
      %p118 = por %p116, %p117
      %p119 = scmp.ne.s32.totalorder %s105, %s106
      %p120 = scmp.eq.s32.totalorder %s21, 2
      %p121 = por %p119, %p120
      %p123 = scmp.ne.s32.totalorder %s106, %s122
      %p124 = scmp.eq.s32.totalorder %s21, 0
      %p125 = por %p123, %p124
      %p126 = scmp.le.s32.totalorder 1, %s15
      %p127 = scmp.lt.s32.totalorder %s15, 4
      %p128 = pnand %p126, %p127
      %p129 = pneg %p128
      // Predicated region
      $region9: #{tpu_custom_call.1} parent=5 // pred_check
        _
      $region10: #{tpu_custom_call.1} parent=5 // pred_check_branch
        %131 = sbr.rel (%p128) target = $region12
      $region11: #{tpu_custom_call.1} parent=5 // pred_region
        %s132 = ssub.s32 %s15, 1
        // Predicated region
        $region13: #{tpu_custom_call.1} parent=11 // pred_check
          %p133 = pneg %p62
        $region14: #{tpu_custom_call.1} parent=11 // pred_check_branch
          %135 = sbr.rel (%p133) target = $region16
        $region15: #{tpu_custom_call.1} parent=11 // pred_region
          %s136 = smul.u32 4, %s25
          %s137 = smul.u32 2, %s27
          %s139 = ssub.s32 1024, 1024
          %140 = vsyncadd [#allocation4], %s139
          %s141 = smul.addr %s136, 2
          %s142 = sadd.s32 %s137, %s141
          %s143 = smul.addr %s142, 128
          %s144 = scalar_lea.hbm %s0, %s143
          %s145 = sshll.u32 [#allocation3], 4
          %s146 = int_to_ptr.vmem [resolvable:$true] %s145
          %151 = dma.hbm_to_vmem [thread:$0]  %s144, 1024, %s146, [#allocation4], 256, 256, 16
        $region16: #{tpu_custom_call.1} parent=11 // pred_fallthru
          _
      $region12: #{tpu_custom_call.1} parent=5 // pred_fallthru
        _
      %p152 = scmp.lt.s32.totalorder %s15, 3
      // Predicated region
      $region17: #{tpu_custom_call.1} parent=5 // pred_check
        %p153 = pneg %p152
      $region18: #{tpu_custom_call.1} parent=5 // pred_check_branch
        %155 = sbr.rel (%p153) target = $region20
      $region19: #{tpu_custom_call.1} parent=5 // pred_region
        // Predicated region
        $region21: #{tpu_custom_call.1} parent=19 // pred_check
          %p156 = pneg %p84
        $region22: #{tpu_custom_call.1} parent=19 // pred_check_branch
          %158 = sbr.rel (%p156) target = $region24
        $region23: #{tpu_custom_call.1} parent=19 // pred_region
          %s159 = sand.u32 %s74, 1
          %s160 = scalar_lea.sflag [#allocation7], %s159
          %s161 = sand.u32 %s74, 1
          %s162 = smul.addr %s161, 512
          %s163 = scalar_lea.vmem [#allocation6], %s162
          %s164 = smul.u32 32, %s24
          %s165 = smul.u32 2, %s23
          %s167 = ssub.s32 8192, 8192
          %168 = vsyncadd %s160, %s167
          %s169 = smul.addr %s164, 6
          %s170 = sadd.s32 %s165, %s169
          %s171 = smul.addr %s170, 128
          %s172 = scalar_lea.hbm %s1, %s171
          %s173 = sshll.u32 %s163, 4
          %s174 = int_to_ptr.vmem [resolvable:$true] %s173
          %179 = dma.hbm_to_vmem [thread:$0]  %s172, 8192, %s174, %s160, 768, 256, 16
        $region24: #{tpu_custom_call.1} parent=19 // pred_fallthru
          _
      $region20: #{tpu_custom_call.1} parent=5 // pred_fallthru
        _
      %p180 = scmp.le.s32.totalorder 1, %s15
      %p181 = scmp.lt.s32.totalorder %s15, 4
      %p182 = pnand %p180, %p181
      %p183 = pneg %p182
      // Predicated region
      $region25: #{tpu_custom_call.1} parent=5 // pred_check
        _
      $region26: #{tpu_custom_call.1} parent=5 // pred_check_branch
        %185 = sbr.rel (%p182) target = $region28
      $region27: #{tpu_custom_call.1} parent=5 // pred_region
        %s186 = ssub.s32 %s15, 1
        // Predicated region
        $region29: #{tpu_custom_call.1} parent=27 // pred_check
          %p187 = pneg %p62
        $region30: #{tpu_custom_call.1} parent=27 // pred_check_branch
          %189 = sbr.rel (%p187) target = $region32
        $region31: #{tpu_custom_call.1} parent=27 // pred_region
          %190 = dma.done [#allocation4], 1024
        $region32: #{tpu_custom_call.1} parent=27 // pred_fallthru
          _
        %s191 = sand.u32 %s77, 1
        %s192 = scalar_lea.sflag [#allocation7], %s191
        %s193 = sand.u32 %s77, 1
        %s194 = smul.addr %s193, 512
        %s195 = scalar_lea.vmem [#allocation6], %s194
        // Predicated region
        $region33: #{tpu_custom_call.1} parent=27 // pred_check
          %p196 = pneg %p90
        $region34: #{tpu_custom_call.1} parent=27 // pred_check_branch
          %198 = sbr.rel (%p196) target = $region36
        $region35: #{tpu_custom_call.1} parent=27 // pred_region
          %199 = dma.done %s192, 8192
        $region36: #{tpu_custom_call.1} parent=27 // pred_fallthru
          _
        %p200 = pneg %p62
        %p201 = pneg %p59
        %s202 = sand.u32 %s77, 1
        %s203 = scalar_lea.sflag [#allocation7], %s202
        %s204 = sand.u32 %s77, 1
        %s205 = smul.addr %s204, 512
        %s206 = scalar_lea.vmem [#allocation6], %s205
        %p207 = pneg %p90
        %p208 = pneg %p87
        %p209 = pneg %p118
        %p210 = pneg %p115
        %s211 = sand.u32 %s105, 1
        %s212 = scalar_lea.sflag [#allocation5], %s211
        %s213 = sand.u32 %s105, 1
        %s214 = smul.addr %s213, 64
        %s215 = scalar_lea.vmem [#allocation8], %s214
        %s216 = smul.u32 4, %s25
        %s217 = smul.u32 2, %s27
        %s218 = smul.u32 32, %s27
        %s219 = smul.u32 2, %s26
        %s220 = smul.u32 4, %s25
        %s221 = smul.u32 2, %s26
        %p222 = scmp.eq.s32.totalorder %s27, 0
        // Predicated region
        $region37: #{tpu_custom_call.1} parent=27 // pred_check
          %p223 = pneg %p222
        $region38: #{tpu_custom_call.1} parent=27 // pred_check_branch
          %225 = sbr.rel (%p223) target = $region40
        $region39: #{tpu_custom_call.1} parent=27 // pred_region
          %226 = vst [vmem:[#allocation2] sm:$0xff] 0.0
          %227 = vst [vmem:[#allocation2 + $0x8] sm:$0xff] 0.0
          %228 = vst [vmem:[#allocation2 + $0x10] sm:$0xff] 0.0
          %229 = vst [vmem:[#allocation2 + $0x18] sm:$0xff] 0.0
          %230 = vst [vmem:[#allocation2 + $0x20] sm:$0xff] 0.0
          %231 = vst [vmem:[#allocation2 + $0x28] sm:$0xff] 0.0
          %232 = vst [vmem:[#allocation2 + $0x30] sm:$0xff] 0.0
          %233 = vst [vmem:[#allocation2 + $0x38] sm:$0xff] 0.0
        $region40: #{tpu_custom_call.1} parent=27 // pred_fallthru
          _
        %v234 = vld [vmem:[#allocation2] sm:$0xff]
        %v235 = vld [vmem:[#allocation2 + $0x8] sm:$0xff]
        %v236 = vld [vmem:[#allocation2 + $0x10] sm:$0xff]
        %v237 = vld [vmem:[#allocation2 + $0x18] sm:$0xff]
        %v238 = vld [vmem:[#allocation2 + $0x20] sm:$0xff]
        %v239 = vld [vmem:[#allocation2 + $0x28] sm:$0xff]
        %v240 = vld [vmem:[#allocation2 + $0x30] sm:$0xff]
        %v241 = vld [vmem:[#allocation2 + $0x38] sm:$0xff]
        %v242 = vld [vmem:[#allocation3] sm:$0xff]
        %v243 = vld [vmem:[#allocation3 + $0x8] sm:$0xff]
        %v244 = vld [vmem:[#allocation3 + $0x10] sm:$0xff]
        %v245 = vld [vmem:[#allocation3 + $0x18] sm:$0xff]
        %v246 = vld [vmem:[#allocation3 + $0x20] sm:$0xff]
        %v247 = vld [vmem:[#allocation3 + $0x28] sm:$0xff]
        %v248 = vld [vmem:[#allocation3 + $0x30] sm:$0xff]
        %v249 = vld [vmem:[#allocation3 + $0x38] sm:$0xff]
        %v250 = vld [vmem:[%s195] sm:$0xff]
        %v251 = vld [vmem:[%s195 + $0x8] sm:$0xff]
        %v252 = vld [vmem:[%s195 + $0x10] sm:$0xff]
        %v253 = vld [vmem:[%s195 + $0x18] sm:$0xff]
        %v254 = vld [vmem:[%s195 + $0x20] sm:$0xff]
        %v255 = vld [vmem:[%s195 + $0x28] sm:$0xff]
        %v256 = vld [vmem:[%s195 + $0x30] sm:$0xff]
        %v257 = vld [vmem:[%s195 + $0x38] sm:$0xff]
        %v258 = vld [vmem:[%s195 + $0x40] sm:$0xff]
        %v259 = vld [vmem:[%s195 + $0x48] sm:$0xff]
        %v260 = vld [vmem:[%s195 + $0x50] sm:$0xff]
        %v261 = vld [vmem:[%s195 + $0x58] sm:$0xff]
        %v262 = vld [vmem:[%s195 + $0x60] sm:$0xff]
        %v263 = vld [vmem:[%s195 + $0x68] sm:$0xff]
        %v264 = vld [vmem:[%s195 + $0x70] sm:$0xff]
        %v265 = vld [vmem:[%s195 + $0x78] sm:$0xff]
        %v266 = vld [vmem:[%s195 + $0x80] sm:$0xff]
        %v267 = vld [vmem:[%s195 + $0x88] sm:$0xff]
        %v268 = vld [vmem:[%s195 + $0x90] sm:$0xff]
        %v269 = vld [vmem:[%s195 + $0x98] sm:$0xff]
        %v270 = vld [vmem:[%s195 + $0xa0] sm:$0xff]
        %v271 = vld [vmem:[%s195 + $0xa8] sm:$0xff]
        %v272 = vld [vmem:[%s195 + $0xb0] sm:$0xff]
        %v273 = vld [vmem:[%s195 + $0xb8] sm:$0xff]
        %v274 = vld [vmem:[%s195 + $0xc0] sm:$0xff]
        %v275 = vld [vmem:[%s195 + $0xc8] sm:$0xff]
        %v276 = vld [vmem:[%s195 + $0xd0] sm:$0xff]
        %v277 = vld [vmem:[%s195 + $0xd8] sm:$0xff]
        %v278 = vld [vmem:[%s195 + $0xe0] sm:$0xff]
        %v279 = vld [vmem:[%s195 + $0xe8] sm:$0xff]
        %v280 = vld [vmem:[%s195 + $0xf0] sm:$0xff]
        %v281 = vld [vmem:[%s195 + $0xf8] sm:$0xff]
        %v282 = vld [vmem:[%s195 + $0x100] sm:$0xff]
        %v283 = vld [vmem:[%s195 + $0x108] sm:$0xff]
        %v284 = vld [vmem:[%s195 + $0x110] sm:$0xff]
        %v285 = vld [vmem:[%s195 + $0x118] sm:$0xff]
        %v286 = vld [vmem:[%s195 + $0x120] sm:$0xff]
        %v287 = vld [vmem:[%s195 + $0x128] sm:$0xff]
        %v288 = vld [vmem:[%s195 + $0x130] sm:$0xff]
        %v289 = vld [vmem:[%s195 + $0x138] sm:$0xff]
        %v290 = vld [vmem:[%s195 + $0x140] sm:$0xff]
        %v291 = vld [vmem:[%s195 + $0x148] sm:$0xff]
        %v292 = vld [vmem:[%s195 + $0x150] sm:$0xff]
        %v293 = vld [vmem:[%s195 + $0x158] sm:$0xff]
        %v294 = vld [vmem:[%s195 + $0x160] sm:$0xff]
        %v295 = vld [vmem:[%s195 + $0x168] sm:$0xff]
        %v296 = vld [vmem:[%s195 + $0x170] sm:$0xff]
        %v297 = vld [vmem:[%s195 + $0x178] sm:$0xff]
        %v298 = vld [vmem:[%s195 + $0x180] sm:$0xff]
        %v299 = vld [vmem:[%s195 + $0x188] sm:$0xff]
        %v300 = vld [vmem:[%s195 + $0x190] sm:$0xff]
        %v301 = vld [vmem:[%s195 + $0x198] sm:$0xff]
        %v302 = vld [vmem:[%s195 + $0x1a0] sm:$0xff]
        %v303 = vld [vmem:[%s195 + $0x1a8] sm:$0xff]
        %v304 = vld [vmem:[%s195 + $0x1b0] sm:$0xff]
        %v305 = vld [vmem:[%s195 + $0x1b8] sm:$0xff]
        %v306 = vld [vmem:[%s195 + $0x1c0] sm:$0xff]
        %v307 = vld [vmem:[%s195 + $0x1c8] sm:$0xff]
        %v308 = vld [vmem:[%s195 + $0x1d0] sm:$0xff]
        %v309 = vld [vmem:[%s195 + $0x1d8] sm:$0xff]
        %v310 = vld [vmem:[%s195 + $0x1e0] sm:$0xff]
        %v311 = vld [vmem:[%s195 + $0x1e8] sm:$0xff]
        %v312 = vld [vmem:[%s195 + $0x1f0] sm:$0xff]
        %v313 = vld [vmem:[%s195 + $0x1f8] sm:$0xff]
        %314 = vmatprep.subr.mxu0 %v251
        %315 = vmatpush1.msra.mxu0 %v250
        %316 = vmatprep.subr.mxu0 %v253
        %317 = vmatpush1.msra.mxu0 %v252
        %318 = vmatprep.subr.mxu0 %v255
        %319 = vmatpush1.msra.mxu0 %v254
        %320 = vmatprep.subr.mxu0 %v257
        %321 = vmatpush1.msra.mxu0 %v256
        %322 = vmatprep.subr.mxu0 %v259
        %323 = vmatpush1.msra.mxu0 %v258
        %324 = vmatprep.subr.mxu0 %v261
        %325 = vmatpush1.msra.mxu0 %v260
        %326 = vmatprep.subr.mxu0 %v263
        %327 = vmatpush1.msra.mxu0 %v262
        %328 = vmatprep.subr.mxu0 %v265
        %329 = vmatpush1.msra.mxu0 %v264
        %330 = vmatprep.subr.mxu0 %v267
        %331 = vmatpush1.msra.mxu0 %v266
        %332 = vmatprep.subr.mxu0 %v269
        %333 = vmatpush1.msra.mxu0 %v268
        %334 = vmatprep.subr.mxu0 %v271
        %335 = vmatpush1.msra.mxu0 %v270
        %336 = vmatprep.subr.mxu0 %v273
        %337 = vmatpush1.msra.mxu0 %v272
        %338 = vmatprep.subr.mxu0 %v275
        %339 = vmatpush1.msra.mxu0 %v274
        %340 = vmatprep.subr.mxu0 %v277
        %341 = vmatpush1.msra.mxu0 %v276
        %342 = vmatprep.subr.mxu0 %v279
        %343 = vmatpush1.msra.mxu0 %v278
        %344 = vmatprep.subr.mxu0 %v281
        %345 = vmatpush1.msra.mxu0 %v280
        %346 = vmatprep.subr.mxu0 %v283
        %347 = vmatpush1.msra.mxu0 %v282
        %348 = vmatprep.subr.mxu0 %v285
        %349 = vmatpush1.msra.mxu0 %v284
        %350 = vmatprep.subr.mxu0 %v287
        %351 = vmatpush1.msra.mxu0 %v286
        %352 = vmatprep.subr.mxu0 %v289
        %353 = vmatpush1.msra.mxu0 %v288
        %354 = vmatprep.subr.mxu0 %v291
        %355 = vmatpush1.msra.mxu0 %v290
        %356 = vmatprep.subr.mxu0 %v293
        %357 = vmatpush1.msra.mxu0 %v292
        %358 = vmatprep.subr.mxu0 %v295
        %359 = vmatpush1.msra.mxu0 %v294
        %360 = vmatprep.subr.mxu0 %v297
        %361 = vmatpush1.msra.mxu0 %v296
        %362 = vmatprep.subr.mxu0 %v299
        %363 = vmatpush1.msra.mxu0 %v298
        %364 = vmatprep.subr.mxu0 %v301
        %365 = vmatpush1.msra.mxu0 %v300
        %366 = vmatprep.subr.mxu0 %v303
        %367 = vmatpush1.msra.mxu0 %v302
        %368 = vmatprep.subr.mxu0 %v305
        %369 = vmatpush1.msra.mxu0 %v304
        %370 = vmatprep.subr.mxu0 %v307
        %371 = vmatpush1.msra.mxu0 %v306
        %372 = vmatprep.subr.mxu0 %v309
        %373 = vmatpush1.msra.mxu0 %v308
        %374 = vmatprep.subr.mxu0 %v311
        %375 = vmatpush1.msra.mxu0 %v310
        %376 = vmatprep.subr.mxu0 %v313
        %377 = vmatpush1.msra.mxu0 %v312
        %378 = vmatprep.mubr.f32.mxu0 %v243
        %379 = vmatmul.mubr.f32.gmra.mrb[0].mxu0 %v242
        %v380 = vpop.f32.mrb[0].mxu0
        %v381 = vadd.f32 0.0, %v380
        %v382 = vpop.f32.mrb[0].mxu0
        %v383 = vadd.f32 0.0, %v382
        %384 = vmatprep.mubr.f32.mxu0 %v245
        %385 = vmatmul.mubr.f32.gmra.mrb[0].mxu0 %v244
        %v386 = vpop.f32.mrb[0].mxu0
        %v387 = vadd.f32 0.0, %v386
        %v388 = vpop.f32.mrb[0].mxu0
        %v389 = vadd.f32 0.0, %v388
        %390 = vmatprep.mubr.f32.mxu0 %v247
        %391 = vmatmul.mubr.f32.gmra.mrb[0].mxu0 %v246
        %v392 = vpop.f32.mrb[0].mxu0
        %v393 = vadd.f32 0.0, %v392
        %v394 = vpop.f32.mrb[0].mxu0
        %v395 = vadd.f32 0.0, %v394
        %396 = vmatprep.mubr.f32.mxu0 %v249
        %397 = vmatmul.mubr.f32.gmra.mrb[0].mxu0 %v248
        %v398 = vpop.f32.mrb[0].mxu0
        %v399 = vadd.f32 0.0, %v398
        %v400 = vpop.f32.mrb[0].mxu0
        %v401 = vadd.f32 0.0, %v400
        %402 = vdwg.mxu0
        %v403 = vadd.f32 %v234, %v381
        %v404 = vadd.f32 %v235, %v383
        %v405 = vadd.f32 %v236, %v387
        %v406 = vadd.f32 %v237, %v389
        %v407 = vadd.f32 %v238, %v393
        %v408 = vadd.f32 %v239, %v395
        %v409 = vadd.f32 %v240, %v399
        %v410 = vadd.f32 %v241, %v401
        %411 = vst [vmem:[#allocation2] sm:$0xff] %v403
        %412 = vst [vmem:[#allocation2 + $0x8] sm:$0xff] %v404
        %413 = vst [vmem:[#allocation2 + $0x10] sm:$0xff] %v405
        %414 = vst [vmem:[#allocation2 + $0x18] sm:$0xff] %v406
        %415 = vst [vmem:[#allocation2 + $0x20] sm:$0xff] %v407
        %416 = vst [vmem:[#allocation2 + $0x28] sm:$0xff] %v408
        %417 = vst [vmem:[#allocation2 + $0x30] sm:$0xff] %v409
        %418 = vst [vmem:[#allocation2 + $0x38] sm:$0xff] %v410
        // Predicated region
        $region41: #{tpu_custom_call.1} parent=27 // pred_check
          %p419 = pneg %p222
        $region42: #{tpu_custom_call.1} parent=27 // pred_check_branch
          %421 = sbr.rel (%p419) target = $region44
        $region43: #{tpu_custom_call.1} parent=27 // pred_region
          %v422 = vld [vmem:[#allocation2] sm:$0xff]
          %v423 = vld [vmem:[#allocation2 + $0x8] sm:$0xff]
          %v424 = vld [vmem:[#allocation2 + $0x10] sm:$0xff]
          %v425 = vld [vmem:[#allocation2 + $0x18] sm:$0xff]
          %v426 = vld [vmem:[#allocation2 + $0x20] sm:$0xff]
          %v427 = vld [vmem:[#allocation2 + $0x28] sm:$0xff]
          %v428 = vld [vmem:[#allocation2 + $0x30] sm:$0xff]
          %v429 = vld [vmem:[#allocation2 + $0x38] sm:$0xff]
          %430 = vst [vmem:[%s215] sm:$0xff] %v422
          %431 = vst [vmem:[%s215 + $0x8] sm:$0xff] %v423
          %432 = vst [vmem:[%s215 + $0x10] sm:$0xff] %v424
          %433 = vst [vmem:[%s215 + $0x18] sm:$0xff] %v425
          %434 = vst [vmem:[%s215 + $0x20] sm:$0xff] %v426
          %435 = vst [vmem:[%s215 + $0x28] sm:$0xff] %v427
          %436 = vst [vmem:[%s215 + $0x30] sm:$0xff] %v428
          %437 = vst [vmem:[%s215 + $0x38] sm:$0xff] %v429
        $region44: #{tpu_custom_call.1} parent=27 // pred_fallthru
          _
        %s438 = sand.u32 %s105, 1
        %s439 = scalar_lea.sflag [#allocation5], %s438
        %s440 = sand.u32 %s105, 1
        %s441 = smul.addr %s440, 64
        %s442 = scalar_lea.vmem [#allocation8], %s441
        // Predicated region
        $region45: #{tpu_custom_call.1} parent=27 // pred_check
          %p443 = pneg %p115
        $region46: #{tpu_custom_call.1} parent=27 // pred_check_branch
          %445 = sbr.rel (%p443) target = $region48
        $region47: #{tpu_custom_call.1} parent=27 // pred_region
          %s446 = smul.u32 4, %s25
          %s447 = smul.u32 2, %s26
          %s449 = ssub.s32 1024, 1024
          %450 = vsyncadd %s439, %s449
          %s451 = smul.addr %s446, 6
          %s452 = sadd.s32 %s447, %s451
          %s453 = smul.addr %s452, 128
          %s454 = scalar_lea.hbm %s2, %s453
          %s455 = sshll.u32 %s442, 4
          %s456 = int_to_ptr.vmem [resolvable:$true] %s455
          %461 = dma.vmem_to_hbm [thread:$0]  %s456, 1024, %s454, %s439, 256, 768, 16
        $region48: #{tpu_custom_call.1} parent=27 // pred_fallthru
          _
      $region28: #{tpu_custom_call.1} parent=5 // pred_fallthru
        _
      %p462 = scmp.le.s32.totalorder 2, %s15
      // Predicated region
      $region49: #{tpu_custom_call.1} parent=5 // pred_check
        %p463 = pneg %p462
      $region50: #{tpu_custom_call.1} parent=5 // pred_check_branch
        %465 = sbr.rel (%p463) target = $region52
      $region51: #{tpu_custom_call.1} parent=5 // pred_region
        %s466 = ssub.s32 %s15, 2
        // Predicated region
        $region53: #{tpu_custom_call.1} parent=51 // pred_check
          %p467 = pneg %p121
        $region54: #{tpu_custom_call.1} parent=51 // pred_check_branch
          %469 = sbr.rel (%p467) target = $region56
        $region55: #{tpu_custom_call.1} parent=51 // pred_region
          %s470 = sand.u32 %s106, 1
          %s471 = scalar_lea.sflag [#allocation5], %s470
          %s472 = sand.u32 %s106, 1
          %s473 = smul.addr %s472, 64
          %s474 = scalar_lea.vmem [#allocation8], %s473
          %475 = dma.done %s471, 1024
        $region56: #{tpu_custom_call.1} parent=51 // pred_fallthru
          _
      $region52: #{tpu_custom_call.1} parent=5 // pred_fallthru
        _
    $region6: #{tpu_custom_call.1} parent=1 // loop_footer
      %s19 = sadd.s32 1, %s15
    $region7: #{tpu_custom_call.1} parent=1 // loop_footer_branch
      %14 = sbr.rel target = $region3
    $region8: #{tpu_custom_call.1} parent=1 // loop_exit
      _
    %476 = vsyncpa [#allocation4], 1
    %s477 = scalar_lea.sflag [#allocation4], 1
    %478 = vsyncpa %s477, 1
    %479 = vsyncpa [#allocation7], 1
    %s480 = scalar_lea.sflag [#allocation7], 1
    %481 = vsyncpa %s480, 1
    %482 = vsyncpa [#allocation5], 1
    %s483 = scalar_lea.sflag [#allocation5], 1
    %484 = vsyncpa %s483, 1

</llo_original>
